<compile_context>
chip_gen: v6e
topology: v6e:2x2x1
jax: 0.10.0
libtpu: 0.0.40
codegen_flags: <defaults>
</compile_context>

<pallas_src>
import functools
import numbers

import jax
import jax.numpy as jnp
from jax import lax
from jax.experimental import pallas as pl
from jax.experimental.pallas import tpu as pltpu

_LANE = 128
_SUBLANE = 8
# 512 x 1024 f32 = 2 MiB per buffer; in+out double-buffered = 8 MiB VMEM.
_MAX_BLOCK_ELEMS = 512 * 1024


def _specialize_pow(exponent):
    """Return (fn, transcendentals_per_elem) computing x ** exponent."""
    e = float(exponent)
    if e.is_integer() and abs(e) <= 64:
        k = int(e)
        if k == 0:
            return (lambda x: jnp.ones_like(x)), 0
        if k == 1:
            return (lambda x: x), 0

        def int_pow(x, k=k):
            # Exponentiation by squaring: only VALU multiplies.
            m = abs(k)
            result = None
            base = x
            while m:
                if m & 1:
                    result = base if result is None else result * base
                m >>= 1
                if m:
                    base = base * base
            if k < 0:
                result = jnp.reciprocal(result)
            return result

        return int_pow, 0
    if e == 0.5:
        return jnp.sqrt, 1
    if e == -0.5:
        return lax.rsqrt, 1
    # General float exponent: exp(e * log(x)) on the EUP (fallback only).
    return (lambda x: jnp.power(x, jnp.asarray(e, dtype=x.dtype))), 2


def _pow_scalar_kernel(x_ref, o_ref, *, pow_fn, compute_dtype):
    xv = x_ref[...].astype(compute_dtype)
    o_ref[...] = pow_fn(xv).astype(o_ref.dtype)


def _pow_tensor_kernel(x_ref, e_ref, o_ref, *, compute_dtype):
    xv = x_ref[...].astype(compute_dtype)
    ev = e_ref[...].astype(compute_dtype)
    o_ref[...] = jnp.power(xv, ev).astype(o_ref.dtype)


def _to_slab(flat, n):
    """Reshape a flat array to a lane-dense 2D slab (rows, lane_width)."""
    lane_width = None
    for lw in (4096, 2048, 1024, 512, 256, _LANE):
        if n % lw == 0:
            lane_width = lw
            break
    pad = 0
    if lane_width is None:
        # Awkward size: pad only a small (<128-element) tail.
        lane_width = _LANE
        pad = (-n) % _LANE
        flat = jnp.pad(flat, (0, pad), constant_values=1)
    rows = flat.size // lane_width
    return flat.reshape(rows, lane_width), rows, lane_width, pad


def _pick_blocks(rows, lane_width):
    max_block_rows = max(_SUBLANE, _MAX_BLOCK_ELEMS // lane_width)
    if rows <= max_block_rows:
        block_rows = rows            # full extent along this axis (always legal)
    else:
        block_rows = max_block_rows  # multiple of 8; uneven tail block is masked
    return block_rows, (pl.cdiv(rows, block_rows),)


def _compute_dtype_for(dtype):
    # v5e has no bf16 VPU/EUP -> compute sub-32-bit floats in f32.
    if jnp.issubdtype(dtype, jnp.floating) and jnp.dtype(dtype).itemsize < 4:
        return jnp.float32
    return jnp.dtype(dtype)


def pallas_pow(x: jax.Array, exponent) -> jax.Array:
    """Elementwise x ** exponent, matching torch.Tensor.pow."""
    orig_shape = x.shape
    orig_dtype = x.dtype
    n = x.size
    if n == 0:
        return x

    scalar_exp = isinstance(exponent, numbers.Number) and not isinstance(exponent, bool)

    if scalar_exp:
        # torch promotes integer tensors to float when the exponent is a python float.
        if jnp.issubdtype(orig_dtype, jnp.integer) and isinstance(exponent, float):
            out_dtype = jnp.dtype(jnp.float32)
        else:
            out_dtype = jnp.dtype(orig_dtype)

        flat = x.reshape(-1)
        x2d, rows, lane_width, pad = _to_slab(flat, n)
        block_rows, grid = _pick_blocks(rows, lane_width)

        compute_dtype = _compute_dtype_for(out_dtype)
        pow_fn, n_transc = _specialize_pow(exponent)
        kernel = functools.partial(
            _pow_scalar_kernel, pow_fn=pow_fn, compute_dtype=compute_dtype
        )

        itemsize = jnp.dtype(orig_dtype).itemsize
        cost = pl.CostEstimate(
            flops=n,
            transcendentals=n_transc * n,
            bytes_accessed=n * itemsize + n * out_dtype.itemsize,
        )

        out2d = pl.pallas_call(
            kernel,
            out_shape=jax.ShapeDtypeStruct((rows, lane_width), out_dtype),
            grid=grid,
            in_specs=[pl.BlockSpec((block_rows, lane_width), lambda i: (i, 0))],
            out_specs=pl.BlockSpec((block_rows, lane_width), lambda i: (i, 0)),
            compiler_params=pltpu.CompilerParams(
                dimension_semantics=("parallel",),  # sharded across both TCs on v7x
            ),
            cost_estimate=cost,
        )(x2d)

    else:
        # Tensor exponent: broadcast to x's shape and pass as a second operand.
        e = jnp.asarray(exponent)
        out_dtype = jnp.result_type(orig_dtype, e.dtype)
        out_shape = jnp.broadcast_shapes(orig_shape, e.shape)
        if out_shape != orig_shape:
            x = jnp.broadcast_to(x, out_shape)
            orig_shape = out_shape
            n = x.size
        e = jnp.broadcast_to(e, orig_shape)

        x2d, rows, lane_width, pad = _to_slab(x.reshape(-1), n)
        e2d, _, _, _ = _to_slab(e.reshape(-1), n)
        block_rows, grid = _pick_blocks(rows, lane_width)

        compute_dtype = _compute_dtype_for(out_dtype)
        kernel = functools.partial(_pow_tensor_kernel, compute_dtype=compute_dtype)

        cost = pl.CostEstimate(
            flops=n,
            transcendentals=2 * n,
            bytes_accessed=n * jnp.dtype(orig_dtype).itemsize
            + n * jnp.dtype(e.dtype).itemsize
            + n * jnp.dtype(out_dtype).itemsize,
        )

        out2d = pl.pallas_call(
            kernel,
            out_shape=jax.ShapeDtypeStruct((rows, lane_width), out_dtype),
            grid=grid,
            in_specs=[
                pl.BlockSpec((block_rows, lane_width), lambda i: (i, 0)),
                pl.BlockSpec((block_rows, lane_width), lambda i: (i, 0)),
            ],
            out_specs=pl.BlockSpec((block_rows, lane_width), lambda i: (i, 0)),
            compiler_params=pltpu.CompilerParams(
                dimension_semantics=("parallel",),
            ),
            cost_estimate=cost,
        )(x2d, e2d)

    out = out2d.reshape(-1)
    if pad:
        out = out[:n]
    return out.reshape(orig_shape)


class Pow:
    """JAX/Pallas counterpart of torchoutil.nn.modules.tensor.Pow."""

    def __init__(self, exponent):
        self.exponent = exponent

    def __call__(self, x: jax.Array) -> jax.Array:
        return pallas_pow(x, self.exponent)


if __name__ == "__main__":
    key = jax.random.PRNGKey(0)
    # Small NCHW input consistent with a typical tensor-op module.
    x = jax.random.normal(key, (2, 4, 16, 16), dtype=jnp.float32)

    # --- scalar (integer-valued) exponent: the canonical Pow(2) use case ---
    exponent = 2.0
    module = Pow(exponent)
    y = jax.block_until_ready(module(x))
    ref = jnp.power(x, jnp.float32(exponent))
    assert y.shape == x.shape and y.dtype == x.dtype
    assert jnp.allclose(y, ref, rtol=1e-6, atol=1e-6)

    # --- scalar fractional exponent (sqrt path) on a non-negative input ---
    x_pos = jnp.abs(x) + 0.1
    y_sqrt = jax.block_until_ready(Pow(0.5)(x_pos))
    assert jnp.allclose(y_sqrt, jnp.sqrt(x_pos), rtol=1e-6, atol=1e-6)

    # --- tensor exponent, broadcast over the channel dim ---
    e_tensor = jnp.array([1.0, 2.0, 3.0, 0.5], dtype=jnp.float32).reshape(1, 4, 1, 1)
    y_t = jax.block_until_ready(Pow(e_tensor)(x_pos))
    ref_t = jnp.power(x_pos, e_tensor)
    assert y_t.shape == x_pos.shape
    assert jnp.allclose(y_t, ref_t, rtol=1e-5, atol=1e-5)

    print("KERNEL_OK")
</pallas_src>

<mosaic_0001>
module attributes {stable_mosaic.version = 11 : i64} {
  func.func @_pow_scalar_kernel(%arg0: i32, %arg1: memref<1x2048xf32, #tpu.memory_space<vmem>>, %arg2: memref<1x2048xf32, #tpu.memory_space<vmem>>) attributes {dimension_semantics = [#tpu.dimension_semantics<parallel>], iteration_bounds = array<i64: 1>, scalar_prefetch = 0 : i64, scratch_operands = 0 : i64, tpu.core_type = #tpu.core_type<tc>, window_params = [{transform_indices = @transform_0, window_bounds = array<i64: 1, 2048>}, {transform_indices = @transform_1, window_bounds = array<i64: 1, 2048>}]} {
    %c0 = arith.constant 0 : index
    %c0_0 = arith.constant 0 : index
    %0 = vector.load %arg1[%c0, %c0_0] : memref<1x2048xf32, #tpu.memory_space<vmem>>, vector<1x2048xf32>
    %1 = arith.mulf %0, %0 : vector<1x2048xf32>
    %c0_1 = arith.constant 0 : index
    %c0_2 = arith.constant 0 : index
    %2 = vector.load %arg2[%c0_1, %c0_2] : memref<1x2048xf32, #tpu.memory_space<vmem>>, vector<1x2048xf32>
    tpu.vector_store %arg2[%c0_1, %c0_2], %1 {strides = array<i32>} : memref<1x2048xf32, #tpu.memory_space<vmem>>, vector<1x2048xf32>,
    return
  }
  func.func @transform_0(%arg0: i32) -> (i32, i32) {
    %c0_i32 = arith.constant 0 : i32
    %c0_i32_0 = arith.constant 0 : i32
    return %arg0, %c0_i32 : i32, i32
  }
  func.func @transform_1(%arg0: i32) -> (i32, i32) {
    %c0_i32 = arith.constant 0 : i32
    %c0_i32_0 = arith.constant 0 : i32
    return %arg0, %c0_i32 : i32, i32
  }
}

</mosaic_0001>

<llo_original>
// kernel: tpu_custom_call.1
$region0: #{tpu_custom_call.1}
  #allocation0 [shape = 'u32[]', space=smem, size = 0x4, offset = 0x4, fixed_abs, tag = 'smem constant byte address 0x4 - core index']
  #allocation1 [shape = 'u32[144,128]{1,0:T(1,128)}', space=vmem, size = 0x12000, scoped, tag = 'internal scratch']
  %s0 = inlined_call_operand.hbm [shape: f32[1,2048], index: 0, kind: input, shape index: {}]
  %s1 = inlined_call_operand.hbm [shape: f32[1,2048], index: 1, kind: output, shape index: {}]
  %s2 = sld [smem:[#allocation0]]
  $region18: #{tpu_custom_call.1} parent=0
    _
  %s4 = ssub.s32 1, %s2
  %s5 = scalar_select 0, %s4, %s2
  $region1: #{tpu_custom_call.1} parent=0
    #allocation2 [shape = 'u8[8192]{0}', space=vmem, size = 0x2000, scoped, tag = 'input window, operand 0, single buffered']
    #allocation3 [shape = 's32[1]{0}', space=sflag, size = 0x4, scoped, tag = 'scoped memory for tpu_custom_call.1']
    #allocation4 [shape = 's32[1]{0}', space=sflag, size = 0x4, scoped, tag = 'scoped memory for tpu_custom_call.1']
    #allocation5 [shape = 'u8[8192]{0}', space=vmem, size = 0x2000, scoped, tag = 'output window, operand 0, single buffered']
    %6 = vsyncpa [#allocation3], 0
    %7 = vsyncpa [#allocation4], 0
    // Predicated region
    $region2: #{tpu_custom_call.1} parent=1 // pred_check
      _
    $region3: #{tpu_custom_call.1} parent=1 // pred_check_branch
      %9 = sbr.rel (0) target = $region5
    $region4: #{tpu_custom_call.1} parent=1 // pred_region
      %s11 = ssub.s32 256, 256
      %12 = vsyncadd [#allocation3], %s11
      %s14 = sshll.u32 [#allocation2], 4
      %s15 = int_to_ptr.vmem [resolvable:$true] %s14
      %17 = dma.hbm_to_vmem [thread:$0]  %s0, 256, %s15, [#allocation3]
    $region5: #{tpu_custom_call.1} parent=1 // pred_fallthru
      _
    // Predicated region
    $region6: #{tpu_custom_call.1} parent=1 // pred_check
      _
    $region7: #{tpu_custom_call.1} parent=1 // pred_check_branch
      %19 = sbr.rel (0) target = $region9
    $region8: #{tpu_custom_call.1} parent=1 // pred_region
      %20 = dma.done [#allocation3], 256
    $region9: #{tpu_custom_call.1} parent=1 // pred_fallthru
      _
    %v21 = vld [vmem:[#allocation2] sm:$0xff]
    %v22 = vld [vmem:[#allocation2 + $0x8] sm:$0xff]
    %v23 = vmul.f32 %v21, %v21
    %v24 = vmul.f32 %v22, %v22
    %25 = vst [vmem:[#allocation5] sm:$0xff] %v23
    %26 = vst [vmem:[#allocation5 + $0x8] sm:$0xff] %v24
    // Predicated region
    $region10: #{tpu_custom_call.1} parent=1 // pred_check
      _
    $region11: #{tpu_custom_call.1} parent=1 // pred_check_branch
      %28 = sbr.rel (0) target = $region13
    $region12: #{tpu_custom_call.1} parent=1 // pred_region
      %s30 = ssub.s32 256, 256
      %31 = vsyncadd [#allocation4], %s30
      %s33 = sshll.u32 [#allocation5], 4
      %s34 = int_to_ptr.vmem [resolvable:$true] %s33
      %36 = dma.vmem_to_hbm [thread:$0]  %s34, 256, %s1, [#allocation4]
    $region13: #{tpu_custom_call.1} parent=1 // pred_fallthru
      _
    // Predicated region
    $region14: #{tpu_custom_call.1} parent=1 // pred_check
      _
    $region15: #{tpu_custom_call.1} parent=1 // pred_check_branch
      %38 = sbr.rel (0) target = $region17
    $region16: #{tpu_custom_call.1} parent=1 // pred_region
      %39 = dma.done [#allocation4], 256
    $region17: #{tpu_custom_call.1} parent=1 // pred_fallthru
      _
    %40 = vsyncpa [#allocation3], 1
    %41 = vsyncpa [#allocation4], 1

</llo_original>
